<compile_context>
chip_gen: v5e
topology: v5e:2x2
jax: 0.10.0
libtpu: 0.0.40
codegen_flags: <defaults>
</compile_context>

<pallas_src>
import math
import functools

import jax
import jax.numpy as jnp
from jax import lax
from jax.experimental import pallas as pl
from jax.experimental.pallas import tpu as pltpu


def _pick_tile(n, target):
    """Largest multiple-of-8 divisor of n that is <= target (falls back to n)."""
    candidates = [t for t in range(8, min(n, target) + 1, 8) if n % t == 0]
    return max(candidates) if candidates else n


# ---------------------------------------------------------------------------
# Kernel 1: dense row-tiled linear projection  y = x @ W^T + b
# (hoists the K / V projections out of the per-query-tile loop)
# ---------------------------------------------------------------------------
def _linear_kernel(x_ref, wt_ref, b_ref, o_ref):
    acc = jnp.dot(x_ref[...], wt_ref[...], preferred_element_type=jnp.float32)
    o_ref[...] = (acc + b_ref[...].astype(jnp.float32)).astype(o_ref.dtype)


def _linear(x, w, b, *, tile_rows=256):
    S, D_in = x.shape
    D_out = w.shape[0]
    tile = _pick_tile(S, tile_rows)
    wt = w.T                      # (in, out): dense full-width MXU contraction
    b2 = b.reshape(1, D_out)
    return pl.pallas_call(
        _linear_kernel,
        out_shape=jax.ShapeDtypeStruct((S, D_out), x.dtype),
        grid=(S // tile,),
        in_specs=[
            pl.BlockSpec((tile, D_in), lambda i: (i, 0)),
            pl.BlockSpec((D_in, D_out), lambda i: (0, 0)),
            pl.BlockSpec((1, D_out), lambda i: (0, 0)),
        ],
        out_specs=pl.BlockSpec((tile, D_out), lambda i: (i, 0)),
        compiler_params=pltpu.CompilerParams(
            dimension_semantics=("parallel",),
            vmem_limit_bytes=32 * 1024 * 1024),
    )(x, wt, b2)


# ---------------------------------------------------------------------------
# Kernel 2: fused  Q-projection + per-head attention + output projection
# ---------------------------------------------------------------------------
def _attn_kernel(seed_ref,                       # SMEM scalar prefetch
                 q_ref, kp_ref, vp_ref,          # raw q tile, projected K / V
                 wq_ref, bq_ref, wo_ref, bo_ref,
                 *rest,
                 num_heads, d_k, scale, dropout_p, training, has_mask):
    if has_mask:
        bias_ref, o_ref, ctx_ref = rest
    else:
        o_ref, ctx_ref = rest

    f32 = jnp.float32
    q_in = q_ref[...]                                            # (tile_q, D), I/O dtype

    # Dense D-wide Q projection for this query tile (full MXU lane width).
    Q = (jnp.dot(q_in, wq_ref[...], preferred_element_type=f32)
         + bq_ref[...].astype(f32)).astype(q_in.dtype)           # (tile_q, D)

    K = kp_ref[...]                                              # (Skv, D)
    V = vp_ref[...]                                              # (Skv, D)
    if has_mask:
        bias = bias_ref[...]                                     # (tile_q, Skv) additive f32

    if training and dropout_p > 0.0:
        # One seed per grid step so query tiles draw independent masks.
        pltpu.prng_seed(seed_ref[0] + pl.program_id(0))
        keep_scale = f32(1.0 / (1.0 - dropout_p))
        thresh = jnp.uint32(min(int(dropout_p * 4294967296.0), 4294967295))

    # Per-head attention; each head's context goes straight into its lane slice
    # of the (tile_q, D) VMEM scratch, so the loop carries no live accumulator.
    for h in range(num_heads):
        lo = h * d_k
        Qh = Q[:, lo:lo + d_k]
        Kh = K[:, lo:lo + d_k]
        Vh = V[:, lo:lo + d_k]

        # scores = Qh @ Kh.T / sqrt(d_k)  (contract over d_k, no transpose op)
        s = lax.dot_general(Qh, Kh, (((1,), (1,)), ((), ())),
                            preferred_element_type=f32) * scale  # (tile_q, Skv) f32
        if has_mask:
            s = s + bias

        # Numerically-stable softmax along the key axis (f32 math).
        s = s - jnp.max(s, axis=-1, keepdims=True)
        e = jnp.exp(s)
        inv = pl.reciprocal(jnp.sum(e, axis=-1, keepdims=True), approx=True)
        p = e * inv

        if training and dropout_p > 0.0:
            # TODO(synk): RNG stream differs from torch's nn.Dropout; only the
            # keep-probability / inverted-scaling semantics match.
            bits = pltpu.bitcast(pltpu.prng_random_bits(p.shape), jnp.uint32)
            p = jnp.where(bits >= thresh, p * keep_scale, jnp.zeros_like(p))

        ctx_ref[:, lo:lo + d_k] = jnp.dot(p.astype(Vh.dtype), Vh,
                                          preferred_element_type=f32)

    # Single dense output projection: concat(heads) @ Wo.T + bo.
    ctx = ctx_ref[...].astype(q_in.dtype)
    out = (jnp.dot(ctx, wo_ref[...], preferred_element_type=f32)
           + bo_ref[...].astype(f32))
    # TODO(synk): the module's attention_scores side-attribute is kept
    # in-register and not materialized; only the forward() value is produced.
    o_ref[...] = out.astype(o_ref.dtype)


def multi_head_attention(q, k, v, params, *, num_heads, mask=None,
                         dropout_p=0.0, training=False, seed=0, tile_q=None):
    """q: (Sq, d_model), k/v: (Skv, d_model).
    params = ((wq,bq),(wk,bk),(wv,bv),(wo,bo)) in torch Linear layout (out,in)."""
    Sq, D = q.shape
    Skv = k.shape[0]
    assert D % num_heads == 0, "d_model is not divisible by num_heads"
    d_k = D // num_heads
    (wq, bq), (wk, bk), (wv, bv), (wo, bo) = params

    # Hoisted: K / V projections computed once (not once per query tile).
    K = _linear(k, wk, bk)
    V = _linear(v, wv, bv)

    wq_t = wq.T
    wo_t = wo.T
    bq2 = bq.reshape(1, D)
    bo2 = bo.reshape(1, D)

    if tile_q is None or Sq % tile_q != 0:
        tile_q = _pick_tile(Sq, 256 if tile_q is None else tile_q)
    grid = (Sq // tile_q,)

    seed_arr = jnp.asarray([seed], dtype=jnp.int32)

    kernel = functools.partial(
        _attn_kernel, num_heads=num_heads, d_k=d_k,
        scale=1.0 / math.sqrt(d_k), dropout_p=float(dropout_p),
        training=bool(training), has_mask=mask is not None)

    tiled_q = lambda i, *_: (i, 0)     # trailing *_ absorbs the prefetch ref
    full2 = lambda i, *_: (0, 0)

    in_specs = [
        pl.BlockSpec((tile_q, D), tiled_q),      # q (raw)
        pl.BlockSpec((Skv, D), full2),           # K (projected, resident)
        pl.BlockSpec((Skv, D), full2),           # V (projected, resident)
        pl.BlockSpec((D, D), full2),             # Wq^T
        pl.BlockSpec((1, D), full2),             # bq
        pl.BlockSpec((D, D), full2),             # Wo^T
        pl.BlockSpec((1, D), full2),             # bo
    ]
    args = [seed_arr, q, K, V, wq_t, bq2, wo_t, bo2]
    if mask is not None:
        # Additive bias computed once (hoists compare/select out of the kernel).
        bias = jnp.where(mask == 0, jnp.float32(-1e9), jnp.float32(0.0))
        in_specs.append(pl.BlockSpec((tile_q, Skv), tiled_q))
        args.append(bias)

    return pl.pallas_call(
        kernel,
        out_shape=jax.ShapeDtypeStruct((Sq, D), q.dtype),
        grid_spec=pltpu.PrefetchScalarGridSpec(
            num_scalar_prefetch=1,
            grid=grid,
            in_specs=in_specs,
            out_specs=pl.BlockSpec((tile_q, D), tiled_q),
            scratch_shapes=[pltpu.VMEM((tile_q, D), jnp.float32)],
        ),
        compiler_params=pltpu.CompilerParams(
            dimension_semantics=("parallel",),
            vmem_limit_bytes=32 * 1024 * 1024),
    )(*args)


def mha_reference(q, k, v, params, num_heads, mask=None):
    """Plain-JAX reference mirroring the torch forward (eval mode)."""
    (wq, bq), (wk, bk), (wv, bv), (wo, bo) = params
    hp = lax.Precision.HIGHEST
    Sq, D = q.shape
    Skv = k.shape[0]
    d_k = D // num_heads
    Q = jnp.dot(q, wq.T, precision=hp) + bq
    K = jnp.dot(k, wk.T, precision=hp) + bk
    V = jnp.dot(v, wv.T, precision=hp) + bv
    Qh = Q.reshape(Sq, num_heads, d_k).transpose(1, 0, 2)
    Kh = K.reshape(Skv, num_heads, d_k).transpose(1, 0, 2)
    Vh = V.reshape(Skv, num_heads, d_k).transpose(1, 0, 2)
    scores = jnp.einsum('hqd,hkd->hqk', Qh, Kh, precision=hp) / math.sqrt(d_k)
    if mask is not None:
        scores = jnp.where(mask[None, :, :] == 0, -1e9, scores)
    attn = jax.nn.softmax(scores, axis=-1)
    out = jnp.einsum('hqk,hkd->hqd', attn, Vh, precision=hp)
    out = out.transpose(1, 0, 2).reshape(Sq, D)
    return jnp.dot(out, wo.T, precision=hp) + bo


if __name__ == "__main__":
    d_model, num_heads, seq_len, dropout = 32, 4, 8, 0.1

    key = jax.random.PRNGKey(0)
    ks = jax.random.split(key, 11)
    scale_w = 0.125  # keep activations O(1), like a trained init

    q = jax.random.normal(ks[0], (seq_len, d_model), jnp.float32)
    k = jax.random.normal(ks[1], (seq_len, d_model), jnp.float32)
    v = jax.random.normal(ks[2], (seq_len, d_model), jnp.float32)

    def lin(wkey, bkey):
        w = scale_w * jax.random.normal(wkey, (d_model, d_model), jnp.float32)
        b = scale_w * jax.random.normal(bkey, (d_model,), jnp.float32)
        return w, b

    params = (lin(ks[3], ks[4]), lin(ks[5], ks[6]),
              lin(ks[7], ks[8]), lin(ks[9], ks[10]))

    # Eval-mode forward (dropout identity), no mask — torch module.eval()(q, k, v).
    out = multi_head_attention(q, k, v, params, num_heads=num_heads,
                               dropout_p=dropout, training=False, seed=0)
    out = jax.block_until_ready(out)
    ref = mha_reference(q, k, v, params, num_heads)
    assert out.shape == (seq_len, d_model)
    err = float(jnp.max(jnp.abs(out - ref)))
    assert jnp.allclose(out, ref, atol=2e-2, rtol=2e-2), f"mismatch vs reference: {err}"

    # Masked path (torch: masked_fill(mask == 0, -1e9) before softmax).
    causal = jnp.tril(jnp.ones((seq_len, seq_len), jnp.int32))
    out_m = jax.block_until_ready(
        multi_head_attention(q, k, v, params, num_heads=num_heads, mask=causal,
                             dropout_p=dropout, training=False, seed=0))
    ref_m = mha_reference(q, k, v, params, num_heads, mask=causal)
    err_m = float(jnp.max(jnp.abs(out_m - ref_m)))
    assert jnp.allclose(out_m, ref_m, atol=2e-2, rtol=2e-2), f"masked mismatch: {err_m}"

    print("KERNEL_OK")
</pallas_src>

<mosaic_0001>
module attributes {stable_mosaic.version = 11 : i64} {
  func.func @_linear_kernel(%arg0: i32, %arg1: memref<8x32xf32, #tpu.memory_space<vmem>>, %arg2: memref<32x32xf32, #tpu.memory_space<vmem>>, %arg3: memref<1x32xf32, #tpu.memory_space<vmem>>, %arg4: memref<8x32xf32, #tpu.memory_space<vmem>>) attributes {dimension_semantics = [#tpu.dimension_semantics<parallel>], iteration_bounds = array<i64: 1>, scalar_prefetch = 0 : i64, scratch_operands = 0 : i64, tpu.core_type = #tpu.core_type<tc>, window_params = [{transform_indices = @transform_0, window_bounds = array<i64: 8, 32>}, {pipeline_mode = #tpu.pipeline_mode<synchronous>, transform_indices = @transform_1, window_bounds = array<i64: 32, 32>}, {pipeline_mode = #tpu.pipeline_mode<synchronous>, transform_indices = @transform_2, window_bounds = array<i64: 1, 32>}, {transform_indices = @transform_3, window_bounds = array<i64: 8, 32>}]} {
    %c0 = arith.constant 0 : index
    %c0_0 = arith.constant 0 : index
    %0 = vector.load %arg1[%c0, %c0_0] : memref<8x32xf32, #tpu.memory_space<vmem>>, vector<8x32xf32>
    %c0_1 = arith.constant 0 : index
    %c0_2 = arith.constant 0 : index
    %1 = vector.load %arg2[%c0_1, %c0_2] : memref<32x32xf32, #tpu.memory_space<vmem>>, vector<32x32xf32>
    %cst = arith.constant dense<0.000000e+00> : vector<8x32xf32>
    %2 = tpu.matmul %0, %1, %cst {dimension_numbers = #tpu.dot_dimension_numbers<[1], [0], [0], [1], [0, 0, 1, 1], [], []>} : vector<8x32xf32>, vector<32x32xf32>, vector<8x32xf32> -> vector<8x32xf32>
    %c0_3 = arith.constant 0 : index
    %c0_4 = arith.constant 0 : index
    %3 = vector.load %arg3[%c0_3, %c0_4] : memref<1x32xf32, #tpu.memory_space<vmem>>, vector<1x32xf32>
    %4 = vector.broadcast %3 : vector<1x32xf32> to vector<8x32xf32>
    %5 = arith.addf %2, %4 : vector<8x32xf32>
    %c0_5 = arith.constant 0 : index
    %c0_6 = arith.constant 0 : index
    %6 = vector.load %arg4[%c0_5, %c0_6] : memref<8x32xf32, #tpu.memory_space<vmem>>, vector<8x32xf32>
    tpu.vector_store %arg4[%c0_5, %c0_6], %5 {strides = array<i32>} : memref<8x32xf32, #tpu.memory_space<vmem>>, vector<8x32xf32>,
    return
  }
  func.func @transform_0(%arg0: i32) -> (i32, i32) {
    %c0_i32 = arith.constant 0 : i32
    %c0_i32_0 = arith.constant 0 : i32
    return %arg0, %c0_i32 : i32, i32
  }
  func.func @transform_1(%arg0: i32) -> (i32, i32) {
    %c0_i32 = arith.constant 0 : i32
    %c0_i32_0 = arith.constant 0 : i32
    %c0_i32_1 = arith.constant 0 : i32
    return %c0_i32, %c0_i32_0 : i32, i32
  }
  func.func @transform_2(%arg0: i32) -> (i32, i32) {
    %c0_i32 = arith.constant 0 : i32
    %c0_i32_0 = arith.constant 0 : i32
    %c0_i32_1 = arith.constant 0 : i32
    return %c0_i32, %c0_i32_0 : i32, i32
  }
  func.func @transform_3(%arg0: i32) -> (i32, i32) {
    %c0_i32 = arith.constant 0 : i32
    %c0_i32_0 = arith.constant 0 : i32
    return %arg0, %c0_i32 : i32, i32
  }
}

</mosaic_0001>

<llo_original>
// kernel: tpu_custom_call.1
$region0: #{tpu_custom_call.1}
  #allocation0 [shape = 'u32[]', space=smem, size = 0x4, offset = 0x4, fixed_abs, tag = 'smem constant byte address 0x4 - core index']
  #allocation1 [shape = 'u32[72,128]{1,0:T(1,128)}', space=vmem, size = 0x9000, scoped, tag = 'internal scratch']
  %s0 = inlined_call_operand.hbm [shape: f32[8,32], index: 0, kind: input, shape index: {}]
  %s1 = inlined_call_operand.hbm [shape: f32[32,32], index: 1, kind: input, shape index: {}]
  %s2 = inlined_call_operand.vmem [shape: f32[1,32], index: 2, kind: input, shape index: {}]
  %s3 = inlined_call_operand.hbm [shape: f32[8,32], index: 3, kind: output, shape index: {}]
  %s4 = sld [smem:[#allocation0]]
  $region30: #{tpu_custom_call.1} parent=0
    _
  %s6 = ssub.s32 1, %s4
  %s7 = scalar_select 0, %s6, %s4
  $region1: #{tpu_custom_call.1} parent=0
    #allocation2 [shape = 'u8[4096]{0}', space=vmem, size = 0x1000, scoped, tag = 'input window, operand 0, single buffered']
    #allocation3 [shape = 's32[1]{0}', space=sflag, size = 0x4, scoped, tag = 'scoped memory for tpu_custom_call.1']
    #allocation4 [shape = 's32[1]{0}', space=sflag, size = 0x4, scoped, tag = 'scoped memory for tpu_custom_call.1']
    #allocation5 [shape = 'u8[16384]{0}', space=vmem, size = 0x4000, scoped, tag = 'input window, operand 1, single buffered']
    #allocation6 [shape = 's32[1]{0}', space=sflag, size = 0x4, scoped, tag = 'scoped memory for tpu_custom_call.1']
    #allocation7 [shape = 'u8[4096]{0}', space=vmem, size = 0x1000, scoped, tag = 'output window, operand 0, single buffered']
    %8 = vsyncpa [#allocation3], 0
    %9 = vsyncpa [#allocation6], 0
    %10 = vsyncpa [#allocation4], 0
    // Predicated region
    $region2: #{tpu_custom_call.1} parent=1 // pred_check
      _
    $region3: #{tpu_custom_call.1} parent=1 // pred_check_branch
      %12 = sbr.rel (0) target = $region5
    $region4: #{tpu_custom_call.1} parent=1 // pred_region
      %14 = vsyncadd [#allocation3], 0
      %s16 = sshll.u32 %s0, 4
      %s17 = int_to_ptr.hbm [resolvable:$true] %s16
      %s18 = sshll.u32 [#allocation2], 4
      %s19 = int_to_ptr.vmem [resolvable:$true] %s18
      %21 = dma.hbm_to_vmem [thread:$0]  %s17, 128, %s19, [#allocation3]
    $region5: #{tpu_custom_call.1} parent=1 // pred_fallthru
      _
    // Predicated region
    $region6: #{tpu_custom_call.1} parent=1 // pred_check
      _
    $region7: #{tpu_custom_call.1} parent=1 // pred_check_branch
      %23 = sbr.rel (0) target = $region9
    $region8: #{tpu_custom_call.1} parent=1 // pred_region
      %25 = vsyncadd [#allocation6], 0
      %s26 = sshll.u32 %s1, 4
      %s27 = int_to_ptr.hbm [resolvable:$true] %s26
      %s28 = sshll.u32 [#allocation5], 4
      %s29 = int_to_ptr.vmem [resolvable:$true] %s28
      %34 = dma.hbm_to_vmem [thread:$0]  %s27, 512, %s29, [#allocation6], 128, 128, 8
    $region9: #{tpu_custom_call.1} parent=1 // pred_fallthru
      _
    // Predicated region
    $region10: #{tpu_custom_call.1} parent=1 // pred_check
      _
    $region11: #{tpu_custom_call.1} parent=1 // pred_check_branch
      %36 = sbr.rel (0) target = $region13
    $region12: #{tpu_custom_call.1} parent=1 // pred_region
      _
    $region13: #{tpu_custom_call.1} parent=1 // pred_fallthru
      _
    // Predicated region
    $region14: #{tpu_custom_call.1} parent=1 // pred_check
      _
    $region15: #{tpu_custom_call.1} parent=1 // pred_check_branch
      %38 = sbr.rel (0) target = $region17
    $region16: #{tpu_custom_call.1} parent=1 // pred_region
      %40 = dma.done [#allocation3], 128
    $region17: #{tpu_custom_call.1} parent=1 // pred_fallthru
      _
    // Predicated region
    $region18: #{tpu_custom_call.1} parent=1 // pred_check
      _
    $region19: #{tpu_custom_call.1} parent=1 // pred_check_branch
      %42 = sbr.rel (0) target = $region21
    $region20: #{tpu_custom_call.1} parent=1 // pred_region
      %44 = dma.done [#allocation6], 512
    $region21: #{tpu_custom_call.1} parent=1 // pred_fallthru
      _
    %v45 = vld [vmem:[#allocation2] sm:$0xff]
    %v46 = vld [vmem:[#allocation5] sm:$0xff]
    %v47 = vld [vmem:[#allocation5 + $0x8] sm:$0xff]
    %v48 = vld [vmem:[#allocation5 + $0x10] sm:$0xff]
    %v49 = vld [vmem:[#allocation5 + $0x18] sm:$0xff]
    %v50 = vld [vmem:[%s2] sm:$0x1]
    %v52 = vperm.slane %v50, 0
    %vm54 = vcmask 261120
    %v56 = vsel %vm54, %v45, 0
    %58 = vmatpush.msra.mxu0 0.0
    %59 = vmatpush.msra.mxu0 0.0
    %60 = vmatpush.msra.mxu0 0.0
    %61 = vmatpush.msra.mxu0 0.0
    %62 = vmatpush.msra.mxu0 0.0
    %63 = vmatpush.msra.mxu0 0.0
    %64 = vmatpush.msra.mxu0 0.0
    %65 = vmatpush.msra.mxu0 0.0
    %66 = vmatpush.msra.mxu0 0.0
    %67 = vmatpush.msra.mxu0 0.0
    %68 = vmatpush.msra.mxu0 0.0
    %69 = vmatpush.msra.mxu0 0.0
    %70 = vmatpush.msra.mxu0 %v49
    %71 = vmatpush.msra.mxu0 %v48
    %72 = vmatpush.msra.mxu0 %v47
    %73 = vmatpush.msra.mxu0 %v46
    %74 = vmatmul.f32.gmra.mxu0 %v56
    %v75 = vpop.f32.mrf.mxu0
    %v76 = vadd.f32 %v52, %v75
    %77 = vdwg.mxu0
    %78 = vst.msk [vmem:[#allocation7] sm:$0xff] %vm54, %v76
    // Predicated region
    $region22: #{tpu_custom_call.1} parent=1 // pred_check
      _
    $region23: #{tpu_custom_call.1} parent=1 // pred_check_branch
      %80 = sbr.rel (0) target = $region25
    $region24: #{tpu_custom_call.1} parent=1 // pred_region
      %82 = vsyncadd [#allocation4], 0
      %s84 = sshll.u32 [#allocation7], 4
      %s85 = int_to_ptr.vmem [resolvable:$true] %s84
      %s86 = sshll.u32 %s3, 4
      %s87 = int_to_ptr.hbm [resolvable:$true] %s86
      %89 = dma.vmem_to_hbm [thread:$0]  %s85, 128, %s87, [#allocation4]
    $region25: #{tpu_custom_call.1} parent=1 // pred_fallthru
      _
    // Predicated region
    $region26: #{tpu_custom_call.1} parent=1 // pred_check
      _
    $region27: #{tpu_custom_call.1} parent=1 // pred_check_branch
      %91 = sbr.rel (0) target = $region29
    $region28: #{tpu_custom_call.1} parent=1 // pred_region
      %93 = dma.done [#allocation4], 128
    $region29: #{tpu_custom_call.1} parent=1 // pred_fallthru
      _
    %94 = vsyncpa [#allocation3], 1
    %95 = vsyncpa [#allocation6], 1
    %96 = vsyncpa [#allocation4], 1

</llo_original>
